<compile_context>
chip_gen: v5e
topology: v5e:2x2
jax: 0.10.0
libtpu: 0.0.40
codegen_flags: <defaults>
</compile_context>

<pallas_src>
import jax
import jax.numpy as jnp
from jax import lax
from jax.experimental import pallas as pl
from jax.experimental.pallas import tpu as pltpu


# ------------------------- helpers -------------------------------------------

def _round_up(x, m):
    return (x + m - 1) // m * m


def _pad2(a, rows, cols):
    return jnp.pad(a, ((0, rows - a.shape[0]), (0, cols - a.shape[1])))


def _largest_divisor_leq(n, cap):
    cap = max(1, min(n, cap))
    for d in range(cap, 0, -1):
        if n % d == 0:
            return d
    return 1


# ------------------------- Pallas kernel -------------------------------------

def _make_kernel(num_mid, time_block, out_width, dot_dtype):
    """Kernel for one (batch-tile, time-chunk) grid step of `time_block` Euler steps.

    Ref order:
      u_ref   : (Tt, Bt, Hp)    streamed  u_t = x_t @ w0x + b0 (precomputed)
      h0_ref  : (Bt, Lp)        initial hidden
      wfused  : (Lp, OUTp+Hp)   [wr | w0h]
      br      : (1, OUTp)
      [wm_i, bm_i] * num_mid    (Hp,Hp), (1,Hp)
      wl_s    : (Hp, Lp)        0.1 * w_last   (Euler scale folded)
      bl_s    : (1, Lp)         0.1 * b_last
      out_ref : (Tt, Bt, OUTp)  per-step readouts
      hid_ref : (Bt, Lp)        resident hidden carry (constant block over time)
      g_ref   : (Bt, Hp)        scratch: hid @ w0h carried across chunks
    """
    unrolled = time_block <= 32

    def kernel(u_ref, h0_ref, *refs):
        out_ref, hid_ref, g_ref = refs[-3], refs[-2], refs[-1]
        wfused, br = refs[0], refs[1]
        mids = refs[2:2 + 2 * num_mid]
        wl_s = refs[2 + 2 * num_mid]
        bl_s = refs[3 + 2 * num_mid]

        c = pl.program_id(1)          # time-chunk index (sequential axis)

        @pl.when(c == 0)
        def _():
            h0 = h0_ref[...]
            hid_ref[...] = h0
            # Prologue: g0 = h0 @ w0h via the fused weight (readout half unused).
            z0 = jnp.dot(h0.astype(dot_dtype), wfused[...],
                         preferred_element_type=jnp.float32)
            g_ref[...] = z0[:, out_width:]

        # Hoist bias loads out of the per-step loop (JAX won't CSE broadcasts).
        br_v = br[...]
        bl_v = bl_s[...]
        bm_vs = [mids[2 * i + 1][...] for i in range(num_mid)]

        def step(s, carry):
            hid, g = carry                                # f32 carries
            h = jnp.maximum(g + u_ref[s], 0.0)            # layer 0 (concat fused)
            for i in range(num_mid):                      # middle layers
                h = jnp.maximum(
                    jnp.dot(h.astype(dot_dtype), mids[2 * i][...],
                            preferred_element_type=jnp.float32) + bm_vs[i],
                    0.0)
            # Euler update; 0.1 already folded into wl_s / bl_s.
            hid = hid + (jnp.dot(h.astype(dot_dtype), wl_s[...],
                                 preferred_element_type=jnp.float32) + bl_v)
            # Single fused matmul: readout + next step's hidden projection.
            z = jnp.dot(hid.astype(dot_dtype), wfused[...],
                        preferred_element_type=jnp.float32)
            out_ref[s] = z[:, :out_width] + br_v
            return hid, z[:, out_width:]

        carry = (hid_ref[...], g_ref[...])
        if unrolled:
            for s in range(time_block):
                carry = step(s, carry)
        else:
            carry = lax.fori_loop(0, time_block, step, carry)
        hid_ref[...] = carry[0]
        g_ref[...] = carry[1]

    return kernel


# ------------------------- Python wrappers ------------------------------------

def sparse_node_rollout(inputs_seq, params, latent_size, hidden=None, *,
                        time_block=None, batch_block=None,
                        dot_dtype=jnp.float32):
    """Run T Euler steps of the SparseNODE cell in ONE pallas_call.

    inputs_seq: (T, B, input_size) float32.
    params:     [(w0, b0), (w_mid, b_mid)*, (w_last, b_last), (wr, br)] with
                weights already transposed to (in_features, out_features).
    Returns (outputs (T, B, output_size), hidden_final (B, latent_size)).
    """
    T, B, IN = inputs_seq.shape
    num_layers = len(params) - 1
    assert num_layers >= 2, "kernel supports the MLPCell with num_layers >= 2"
    num_mid = num_layers - 2

    (w0, b0) = params[0]
    mids = params[1:num_layers - 1]
    (wl, bl) = params[num_layers - 1]
    (wr, br) = params[num_layers]

    H = w0.shape[1]
    OUT = wr.shape[1]
    L = latent_size

    if hidden is None:
        hidden = jnp.zeros((B, L), dtype=jnp.float32)

    # Pad once to the vreg grain: batch -> 8 sublanes, features -> 128 lanes.
    Bp = _round_up(max(B, 8), 8)
    Hp = _round_up(H, 128)
    Lp = _round_up(L, 128)
    OUTp = _round_up(OUT, 128)

    # ---- hoisted input projection: one large matmul outside the recurrence ----
    x32 = inputs_seq.astype(jnp.float32)
    u = jnp.einsum('tbi,ih->tbh', x32, w0[L:].astype(jnp.float32)) + b0
    u_p = jnp.pad(u, ((0, 0), (0, Bp - B), (0, Hp - H))).astype(dot_dtype)

    h0_p = _pad2(hidden.astype(jnp.float32), Bp, Lp)

    # Fused [readout | layer0-hidden] weight: hid_new multiplied once per step.
    # Zero-padded rows/cols keep padded hidden lanes exactly zero through time.
    w_fused = jnp.concatenate(
        [_pad2(wr.astype(jnp.float32), Lp, OUTp),
         _pad2(w0[:L].astype(jnp.float32), Lp, Hp)], axis=1).astype(dot_dtype)
    br_p = _pad2(br.reshape(1, -1).astype(jnp.float32), 1, OUTp)

    wb = [w_fused, br_p]
    for (wm, bm) in mids:
        wb += [_pad2(wm.astype(jnp.float32), Hp, Hp).astype(dot_dtype),
               _pad2(bm.reshape(1, -1).astype(jnp.float32), 1, Hp)]
    # Euler scale folded into the last MLP layer.
    wb += [(0.1 * _pad2(wl.astype(jnp.float32), Hp, Lp)).astype(dot_dtype),
           0.1 * _pad2(bl.reshape(1, -1).astype(jnp.float32), 1, Lp)]

    # ---- time / batch blocking ----
    if time_block is None:
        time_block = _largest_divisor_leq(T, 32)
    else:
        assert T % time_block == 0, "time_block must divide T"
    if batch_block is None:
        batch_block = Bp
    else:
        batch_block = _round_up(batch_block, 8)
        assert Bp % batch_block == 0, "batch_block must divide padded batch"
    Tt, Bt = time_block, batch_block
    n_bt, n_tc = Bp // Bt, T // Tt

    const = lambda shape: pl.BlockSpec(shape, lambda b, c: (0, 0))

    in_specs = [
        pl.BlockSpec((Tt, Bt, Hp), lambda b, c: (c, b, 0)),   # streamed u chunk
        pl.BlockSpec((Bt, Lp), lambda b, c: (b, 0)),          # initial hidden
    ] + [const(a.shape) for a in wb]                          # resident weights

    out_specs = (
        pl.BlockSpec((Tt, Bt, OUTp), lambda b, c: (c, b, 0)),  # per-step outputs
        pl.BlockSpec((Bt, Lp), lambda b, c: (b, 0)),           # resident hidden carry
    )

    flops = T * Bp * (2 * Lp * (OUTp + Hp) + 2 * num_mid * Hp * Hp + 2 * Hp * Lp)
    bytes_accessed = (int(u_p.size) * u_p.dtype.itemsize
                      + T * Bp * OUTp * 4
                      + sum(int(a.size) * a.dtype.itemsize for a in wb)
                      + 2 * Bp * Lp * 4)

    out_p, hid_p = pl.pallas_call(
        _make_kernel(num_mid, Tt, OUTp, dot_dtype),
        out_shape=(
            jax.ShapeDtypeStruct((T, Bp, OUTp), jnp.float32),
            jax.ShapeDtypeStruct((Bp, Lp), jnp.float32),
        ),
        grid=(n_bt, n_tc),
        in_specs=in_specs,
        out_specs=out_specs,
        scratch_shapes=[pltpu.VMEM((Bt, Hp), jnp.float32)],   # hid @ w0h carry
        compiler_params=pltpu.CompilerParams(
            # batch tiles are independent (v7x: both TCs); time is sequential.
            dimension_semantics=("parallel", "arbitrary")),
        cost_estimate=pl.CostEstimate(flops=int(flops), transcendentals=0,
                                      bytes_accessed=int(bytes_accessed)),
    )(u_p, h0_p, *wb)

    return out_p[:, :B, :OUT], hid_p[:B, :L]


def sparse_node_forward(inputs, params, latent_size, hidden=None, **kw):
    """Matches SparseNODE.forward: one Euler step of the cell + linear readout."""
    out_seq, hid_new = sparse_node_rollout(inputs[None], params, latent_size,
                                           hidden, **kw)
    return out_seq[0], hid_new


# ------------------------- Deterministic parameter init ----------------------

def init_params(key, input_size, num_layers, layer_hidden_size, latent_size,
                output_size):
    """Same shapes nn.Linear would create, pre-transposed to (in, out)."""
    dims = [(input_size + latent_size, layer_hidden_size)]       # layer 0
    for _ in range(num_layers - 2):                              # middle layers
        dims.append((layer_hidden_size, layer_hidden_size))
    dims.append((layer_hidden_size, latent_size))                # last layer
    dims.append((latent_size, output_size))                      # readout
    params = []
    for fan_in, fan_out in dims:
        key, kw, kb = jax.random.split(key, 3)
        bound = 1.0 / jnp.sqrt(fan_in)
        w = jax.random.uniform(kw, (fan_in, fan_out), jnp.float32, -bound, bound)
        b = jax.random.uniform(kb, (fan_out,), jnp.float32, -bound, bound)
        params.append((w, b))
    return params


# ------------------------- main ----------------------------------------------

if __name__ == "__main__":
    batch = 2
    input_size = 4
    num_layers = 3
    layer_hidden_size = 32
    latent_size = 32
    output_size = 8
    T = 8                      # rollout length for the fused-time-loop test

    key = jax.random.PRNGKey(0)
    key, k_in = jax.random.split(key)
    inputs_seq = jax.random.normal(k_in, (T, batch, input_size), dtype=jnp.float32)
    params = init_params(key, input_size, num_layers, layer_hidden_size,
                         latent_size, output_size)

    # Pallas: single step (== SparseNODE.forward) and fused T-step rollout.
    out1, hid1 = sparse_node_forward(inputs_seq[0], params, latent_size)
    out_seq, hid_T = sparse_node_rollout(inputs_seq, params, latent_size)
    jax.block_until_ready((out1, hid1, out_seq, hid_T))

    # Pure-JAX reference (same math, no Pallas).
    (w0, b0), (w1, b1), (w2, b2), (wr, br) = params

    def ref_step(x, hid):
        xh = jnp.concatenate([hid, x], axis=1)
        h = jnp.maximum(xh @ w0 + b0, 0.0)
        h = jnp.maximum(h @ w1 + b1, 0.0)
        hid_new = hid + 0.1 * (h @ w2 + b2)
        return hid_new @ wr + br, hid_new

    hid_r = jnp.zeros((batch, latent_size), jnp.float32)
    outs_r = []
    hid_r_step1 = None
    for t in range(T):
        o, hid_r = ref_step(inputs_seq[t], hid_r)
        if t == 0:
            hid_r_step1 = hid_r
        outs_r.append(o)
    outs_r = jnp.stack(outs_r)

    assert jnp.allclose(out1, outs_r[0], atol=1e-5, rtol=1e-5)
    assert jnp.allclose(hid1, hid_r_step1, atol=1e-5, rtol=1e-5)
    assert jnp.allclose(out_seq, outs_r, atol=1e-5, rtol=1e-5)
    assert jnp.allclose(hid_T, hid_r, atol=1e-5, rtol=1e-5)

    # bf16 MXU fast path (v6e/v7x): weights/streamed activations in bf16,
    # f32 accumulation and f32 hidden carry.  Loose tolerance (bf16 rounding).
    out_bf, hid_bf = sparse_node_rollout(inputs_seq, params, latent_size,
                                         dot_dtype=jnp.bfloat16)
    jax.block_until_ready((out_bf, hid_bf))
    assert float(jnp.max(jnp.abs(out_bf - outs_r))) < 5e-2
    assert float(jnp.max(jnp.abs(hid_bf - hid_r))) < 5e-2

    print("KERNEL_OK")
</pallas_src>

<mosaic_0001>
module attributes {stable_mosaic.version = 11 : i64} {
  func.func @kernel(%arg0: i32, %arg1: i32, %arg2: memref<1x8x128xf32, #tpu.memory_space<vmem>>, %arg3: memref<8x128xf32, #tpu.memory_space<vmem>>, %arg4: memref<128x256xf32, #tpu.memory_space<vmem>>, %arg5: memref<1x128xf32, #tpu.memory_space<vmem>>, %arg6: memref<128x128xf32, #tpu.memory_space<vmem>>, %arg7: memref<1x128xf32, #tpu.memory_space<vmem>>, %arg8: memref<128x128xf32, #tpu.memory_space<vmem>>, %arg9: memref<1x128xf32, #tpu.memory_space<vmem>>, %arg10: memref<1x8x128xf32, #tpu.memory_space<vmem>>, %arg11: memref<8x128xf32, #tpu.memory_space<vmem>>, %arg12: memref<8x128xf32, #tpu.memory_space<vmem>>) attributes {dimension_semantics = [#tpu.dimension_semantics<parallel>, #tpu.dimension_semantics<arbitrary>], iteration_bounds = array<i64: 1, 1>, scalar_prefetch = 0 : i64, scratch_operands = 1 : i64, tpu.core_type = #tpu.core_type<tc>, window_params = [{transform_indices = @transform_0, window_bounds = array<i64: 1, 8, 128>}, {transform_indices = @transform_1, window_bounds = array<i64: 8, 128>}, {pipeline_mode = #tpu.pipeline_mode<synchronous>, transform_indices = @transform_2, window_bounds = array<i64: 128, 256>}, {pipeline_mode = #tpu.pipeline_mode<synchronous>, transform_indices = @transform_3, window_bounds = array<i64: 1, 128>}, {pipeline_mode = #tpu.pipeline_mode<synchronous>, transform_indices = @transform_4, window_bounds = array<i64: 128, 128>}, {pipeline_mode = #tpu.pipeline_mode<synchronous>, transform_indices = @transform_5, window_bounds = array<i64: 1, 128>}, {pipeline_mode = #tpu.pipeline_mode<synchronous>, transform_indices = @transform_6, window_bounds = array<i64: 128, 128>}, {pipeline_mode = #tpu.pipeline_mode<synchronous>, transform_indices = @transform_7, window_bounds = array<i64: 1, 128>}, {transform_indices = @transform_8, window_bounds = array<i64: 1, 8, 128>}, {transform_indices = @transform_9, window_bounds = array<i64: 8, 128>}]} {
    %c0_i32 = arith.constant 0 : i32
    %0 = arith.cmpi eq, %arg1, %c0_i32 : i32
    %1 = arith.extui %0 : i1 to i32
    %c0_i32_0 = arith.constant 0 : i32
    %2 = arith.cmpi ne, %1, %c0_i32_0 : i32
    scf.if %2 {
      %c0_30 = arith.constant 0 : index
      %c0_31 = arith.constant 0 : index
      %35 = vector.load %arg3[%c0_30, %c0_31] : memref<8x128xf32, #tpu.memory_space<vmem>>, vector<8x128xf32>
      %c0_32 = arith.constant 0 : index
      %c0_33 = arith.constant 0 : index
      %36 = vector.load %arg11[%c0_32, %c0_33] : memref<8x128xf32, #tpu.memory_space<vmem>>, vector<8x128xf32>
      tpu.vector_store %arg11[%c0_32, %c0_33], %35 {strides = array<i32>} : memref<8x128xf32, #tpu.memory_space<vmem>>, vector<8x128xf32>,
      %c0_34 = arith.constant 0 : index
      %c0_35 = arith.constant 0 : index
      %37 = vector.load %arg4[%c0_34, %c0_35] : memref<128x256xf32, #tpu.memory_space<vmem>>, vector<128x256xf32>
      %cst_36 = arith.constant dense<0.000000e+00> : vector<8x256xf32>
      %38 = tpu.matmul %35, %37, %cst_36 {dimension_numbers = #tpu.dot_dimension_numbers<[1], [0], [0], [1], [0, 0, 1, 1], [], []>} : vector<8x128xf32>, vector<128x256xf32>, vector<8x256xf32> -> vector<8x256xf32>
      %39 = vector.extract_strided_slice %38 {offsets = [0, 128], sizes = [8, 128], strides = [1, 1]} : vector<8x256xf32> to vector<8x128xf32>
      %c0_37 = arith.constant 0 : index
      %c0_38 = arith.constant 0 : index
      %40 = vector.load %arg12[%c0_37, %c0_38] : memref<8x128xf32, #tpu.memory_space<vmem>>, vector<8x128xf32>
      tpu.vector_store %arg12[%c0_37, %c0_38], %39 {strides = array<i32>} : memref<8x128xf32, #tpu.memory_space<vmem>>, vector<8x128xf32>,
    } else {
    }
    %c0 = arith.constant 0 : index
    %c0_1 = arith.constant 0 : index
    %3 = vector.load %arg5[%c0, %c0_1] : memref<1x128xf32, #tpu.memory_space<vmem>>, vector<1x128xf32>
    %c0_2 = arith.constant 0 : index
    %c0_3 = arith.constant 0 : index
    %4 = vector.load %arg9[%c0_2, %c0_3] : memref<1x128xf32, #tpu.memory_space<vmem>>, vector<1x128xf32>
    %c0_4 = arith.constant 0 : index
    %c0_5 = arith.constant 0 : index
    %5 = vector.load %arg7[%c0_4, %c0_5] : memref<1x128xf32, #tpu.memory_space<vmem>>, vector<1x128xf32>
    %c0_6 = arith.constant 0 : index
    %c0_7 = arith.constant 0 : index
    %6 = vector.load %arg11[%c0_6, %c0_7] : memref<8x128xf32, #tpu.memory_space<vmem>>, vector<8x128xf32>
    %c0_8 = arith.constant 0 : index
    %c0_9 = arith.constant 0 : index
    %7 = vector.load %arg12[%c0_8, %c0_9] : memref<8x128xf32, #tpu.memory_space<vmem>>, vector<8x128xf32>
    %c0_10 = arith.constant 0 : index
    %c0_11 = arith.constant 0 : index
    %c0_12 = arith.constant 0 : index
    %8 = vector.load %arg2[%c0_10, %c0_11, %c0_12] : memref<1x8x128xf32, #tpu.memory_space<vmem>>, vector<1x8x128xf32>
    %9 = vector.shape_cast %8 : vector<1x8x128xf32> to vector<8x128xf32>
    %10 = arith.addf %7, %9 : vector<8x128xf32>
    %cst = arith.constant 0.000000e+00 : f32
    %11 = vector.broadcast %cst : f32 to vector<8x128xf32>
    %12 = arith.maximumf %10, %11 : vector<8x128xf32>
    %c0_13 = arith.constant 0 : index
    %c0_14 = arith.constant 0 : index
    %13 = vector.load %arg6[%c0_13, %c0_14] : memref<128x128xf32, #tpu.memory_space<vmem>>, vector<128x128xf32>
    %cst_15 = arith.constant dense<0.000000e+00> : vector<8x128xf32>
    %14 = tpu.matmul %12, %13, %cst_15 {dimension_numbers = #tpu.dot_dimension_numbers<[1], [0], [0], [1], [0, 0, 1, 1], [], []>} : vector<8x128xf32>, vector<128x128xf32>, vector<8x128xf32> -> vector<8x128xf32>
    %15 = vector.broadcast %5 : vector<1x128xf32> to vector<8x128xf32>
    %16 = arith.addf %14, %15 : vector<8x128xf32>
    %cst_16 = arith.constant 0.000000e+00 : f32
    %17 = vector.broadcast %cst_16 : f32 to vector<8x128xf32>
    %18 = arith.maximumf %16, %17 : vector<8x128xf32>
    %c0_17 = arith.constant 0 : index
    %c0_18 = arith.constant 0 : index
    %19 = vector.load %arg8[%c0_17, %c0_18] : memref<128x128xf32, #tpu.memory_space<vmem>>, vector<128x128xf32>
    %cst_19 = arith.constant dense<0.000000e+00> : vector<8x128xf32>
    %20 = tpu.matmul %18, %19, %cst_19 {dimension_numbers = #tpu.dot_dimension_numbers<[1], [0], [0], [1], [0, 0, 1, 1], [], []>} : vector<8x128xf32>, vector<128x128xf32>, vector<8x128xf32> -> vector<8x128xf32>
    %21 = vector.broadcast %4 : vector<1x128xf32> to vector<8x128xf32>
    %22 = arith.addf %20, %21 : vector<8x128xf32>
    %23 = arith.addf %6, %22 : vector<8x128xf32>
    %c0_20 = arith.constant 0 : index
    %c0_21 = arith.constant 0 : index
    %24 = vector.load %arg4[%c0_20, %c0_21] : memref<128x256xf32, #tpu.memory_space<vmem>>, vector<128x256xf32>
    %cst_22 = arith.constant dense<0.000000e+00> : vector<8x256xf32>
    %25 = tpu.matmul %23, %24, %cst_22 {dimension_numbers = #tpu.dot_dimension_numbers<[1], [0], [0], [1], [0, 0, 1, 1], [], []>} : vector<8x128xf32>, vector<128x256xf32>, vector<8x256xf32> -> vector<8x256xf32>
    %26 = vector.extract_strided_slice %25 {offsets = [0, 0], sizes = [8, 128], strides = [1, 1]} : vector<8x256xf32> to vector<8x128xf32>
    %27 = vector.broadcast %3 : vector<1x128xf32> to vector<8x128xf32>
    %28 = arith.addf %26, %27 : vector<8x128xf32>
    %c0_23 = arith.constant 0 : index
    %c0_24 = arith.constant 0 : index
    %c0_25 = arith.constant 0 : index
    %29 = vector.load %arg10[%c0_23, %c0_24, %c0_25] : memref<1x8x128xf32, #tpu.memory_space<vmem>>, vector<1x8x128xf32>
    %30 = vector.shape_cast %29 : vector<1x8x128xf32> to vector<8x128xf32>
    %31 = vector.shape_cast %28 : vector<8x128xf32> to vector<1x8x128xf32>
    tpu.vector_store %arg10[%c0_23, %c0_24, %c0_25], %31 {strides = array<i32>} : memref<1x8x128xf32, #tpu.memory_space<vmem>>, vector<1x8x128xf32>,
    %32 = vector.extract_strided_slice %25 {offsets = [0, 128], sizes = [8, 128], strides = [1, 1]} : vector<8x256xf32> to vector<8x128xf32>
    %c0_26 = arith.constant 0 : index
    %c0_27 = arith.constant 0 : index
    %33 = vector.load %arg11[%c0_26, %c0_27] : memref<8x128xf32, #tpu.memory_space<vmem>>, vector<8x128xf32>
    tpu.vector_store %arg11[%c0_26, %c0_27], %23 {strides = array<i32>} : memref<8x128xf32, #tpu.memory_space<vmem>>, vector<8x128xf32>,
    %c0_28 = arith.constant 0 : index
    %c0_29 = arith.constant 0 : index
    %34 = vector.load %arg12[%c0_28, %c0_29] : memref<8x128xf32, #tpu.memory_space<vmem>>, vector<8x128xf32>
    tpu.vector_store %arg12[%c0_28, %c0_29], %32 {strides = array<i32>} : memref<8x128xf32, #tpu.memory_space<vmem>>, vector<8x128xf32>,
    return
  }
  func.func @transform_0(%arg0: i32, %arg1: i32) -> (i32, i32, i32) {
    %c0_i32 = arith.constant 0 : i32
    %c0_i32_0 = arith.constant 0 : i32
    return %arg1, %arg0, %c0_i32 : i32, i32, i32
  }
  func.func @transform_1(%arg0: i32, %arg1: i32) -> (i32, i32) {
    %c0_i32 = arith.constant 0 : i32
    %c0_i32_0 = arith.constant 0 : i32
    return %arg0, %c0_i32 : i32, i32
  }
  func.func @transform_2(%arg0: i32, %arg1: i32) -> (i32, i32) {
    %c0_i32 = arith.constant 0 : i32
    %c0_i32_0 = arith.constant 0 : i32
    %c0_i32_1 = arith.constant 0 : i32
    return %c0_i32, %c0_i32_0 : i32, i32
  }
  func.func @transform_3(%arg0: i32, %arg1: i32) -> (i32, i32) {
    %c0_i32 = arith.constant 0 : i32
    %c0_i32_0 = arith.constant 0 : i32
    %c0_i32_1 = arith.constant 0 : i32
    return %c0_i32, %c0_i32_0 : i32, i32
  }
  func.func @transform_4(%arg0: i32, %arg1: i32) -> (i32, i32) {
    %c0_i32 = arith.constant 0 : i32
    %c0_i32_0 = arith.constant 0 : i32
    %c0_i32_1 = arith.constant 0 : i32
    return %c0_i32, %c0_i32_0 : i32, i32
  }
  func.func @transform_5(%arg0: i32, %arg1: i32) -> (i32, i32) {
    %c0_i32 = arith.constant 0 : i32
    %c0_i32_0 = arith.constant 0 : i32
    %c0_i32_1 = arith.constant 0 : i32
    return %c0_i32, %c0_i32_0 : i32, i32
  }
  func.func @transform_6(%arg0: i32, %arg1: i32) -> (i32, i32) {
    %c0_i32 = arith.constant 0 : i32
    %c0_i32_0 = arith.constant 0 : i32
    %c0_i32_1 = arith.constant 0 : i32
    return %c0_i32, %c0_i32_0 : i32, i32
  }
  func.func @transform_7(%arg0: i32, %arg1: i32) -> (i32, i32) {
    %c0_i32 = arith.constant 0 : i32
    %c0_i32_0 = arith.constant 0 : i32
    %c0_i32_1 = arith.constant 0 : i32
    return %c0_i32, %c0_i32_0 : i32, i32
  }
  func.func @transform_8(%arg0: i32, %arg1: i32) -> (i32, i32, i32) {
    %c0_i32 = arith.constant 0 : i32
    %c0_i32_0 = arith.constant 0 : i32
    return %arg1, %arg0, %c0_i32 : i32, i32, i32
  }
  func.func @transform_9(%arg0: i32, %arg1: i32) -> (i32, i32) {
    %c0_i32 = arith.constant 0 : i32
    %c0_i32_0 = arith.constant 0 : i32
    return %arg0, %c0_i32 : i32, i32
  }
}

</mosaic_0001>

<llo_original>
// kernel: tpu_custom_call.1
$region0: #{tpu_custom_call.1}
  #allocation0 [shape = 'u32[]', space=smem, size = 0x4, offset = 0x4, fixed_abs, tag = 'smem constant byte address 0x4 - core index']
  #allocation1 [shape = 'u32[72,128]{1,0:T(1,128)}', space=vmem, size = 0x9000, scoped, tag = 'internal scratch']
  #allocation2 [shape = 'f32[8,128]{1,0:T(8,128)}', space=vmem, size = 0x1000, scoped, tag = 'scratch operand']
  %s0 = inlined_call_operand.hbm [shape: f32[1,8,128], index: 0, kind: input, shape index: {}]
  %s1 = inlined_call_operand.hbm [shape: f32[8,128], index: 1, kind: input, shape index: {}]
  %s2 = inlined_call_operand.hbm [shape: f32[128,256], index: 2, kind: input, shape index: {}]
  %s3 = inlined_call_operand.vmem [shape: f32[1,128], index: 3, kind: input, shape index: {}]
  %s4 = inlined_call_operand.hbm [shape: f32[128,128], index: 4, kind: input, shape index: {}]
  %s5 = inlined_call_operand.vmem [shape: f32[1,128], index: 5, kind: input, shape index: {}]
  %s6 = inlined_call_operand.hbm [shape: f32[128,128], index: 6, kind: input, shape index: {}]
  %s7 = inlined_call_operand.vmem [shape: f32[1,128], index: 7, kind: input, shape index: {}]
  %s8 = inlined_call_operand.hbm [shape: f32[1,8,128], index: 8, kind: output, shape index: {0}]
  %s9 = inlined_call_operand.hbm [shape: f32[8,128], index: 9, kind: output, shape index: {1}]
  %10 = xla_tuple %s8, %s9
  %s11 = sld [smem:[#allocation0]]
  $region74: #{tpu_custom_call.1} parent=0
    _
  %s13 = ssub.s32 1, %s11
  %s14 = scalar_select 0, %s13, %s11
  $region1: #{tpu_custom_call.1} parent=0
    #allocation3 [shape = 'u8[4096]{0}', space=vmem, size = 0x1000, scoped, tag = 'input window, operand 0, single buffered']
    #allocation4 [shape = 's32[1]{0}', space=sflag, size = 0x4, scoped, tag = 'scoped memory for tpu_custom_call.1']
    #allocation5 [shape = 's32[1]{0}', space=sflag, size = 0x4, scoped, tag = 'scoped memory for tpu_custom_call.1']
    #allocation6 [shape = 'u8[4096]{0}', space=vmem, size = 0x1000, scoped, tag = 'input window, operand 1, single buffered']
    #allocation7 [shape = 's32[1]{0}', space=sflag, size = 0x4, scoped, tag = 'scoped memory for tpu_custom_call.1']
    #allocation8 [shape = 'u8[131072]{0}', space=vmem, size = 0x20000, scoped, tag = 'input window, operand 2, single buffered']
    #allocation9 [shape = 'u8[65536]{0}', space=vmem, size = 0x10000, scoped, tag = 'input window, operand 4, single buffered']
    #allocation10 [shape = 's32[1]{0}', space=sflag, size = 0x4, scoped, tag = 'scoped memory for tpu_custom_call.1']
    #allocation11 [shape = 'u8[65536]{0}', space=vmem, size = 0x10000, scoped, tag = 'input window, operand 6, single buffered']
    #allocation12 [shape = 'u8[4096]{0}', space=vmem, size = 0x1000, scoped, tag = 'output window, operand 0, single buffered']
    #allocation13 [shape = 'u8[4096]{0}', space=vmem, size = 0x1000, scoped, tag = 'output window, operand 1, single buffered']
    #allocation14 [shape = 's32[1]{0}', space=sflag, size = 0x4, scoped, tag = 'scoped memory for tpu_custom_call.1']
    %15 = vsyncpa [#allocation4], 0
    %16 = vsyncpa [#allocation7], 0
    %17 = vsyncpa [#allocation10], 0
    %18 = vsyncpa [#allocation5], 0
    %19 = vsyncpa [#allocation14], 0
    // Predicated region
    $region2: #{tpu_custom_call.1} parent=1 // pred_check
      _
    $region3: #{tpu_custom_call.1} parent=1 // pred_check_branch
      %21 = sbr.rel (0) target = $region5
    $region4: #{tpu_custom_call.1} parent=1 // pred_region
      %23 = vsyncadd [#allocation4], 0
      %s25 = sshll.u32 %s0, 4
      %s26 = int_to_ptr.hbm [resolvable:$true] %s25
      %s27 = sshll.u32 [#allocation3], 4
      %s28 = int_to_ptr.vmem [resolvable:$true] %s27
      %30 = dma.hbm_to_vmem [thread:$0]  %s26, 128, %s28, [#allocation4]
    $region5: #{tpu_custom_call.1} parent=1 // pred_fallthru
      _
    // Predicated region
    $region6: #{tpu_custom_call.1} parent=1 // pred_check
      _
    $region7: #{tpu_custom_call.1} parent=1 // pred_check_branch
      %32 = sbr.rel (0) target = $region9
    $region8: #{tpu_custom_call.1} parent=1 // pred_region
      %34 = vsyncadd [#allocation7], 0
      %s36 = sshll.u32 %s1, 4
      %s37 = int_to_ptr.hbm [resolvable:$true] %s36
      %s38 = sshll.u32 [#allocation6], 4
      %s39 = int_to_ptr.vmem [resolvable:$true] %s38
      %41 = dma.hbm_to_vmem [thread:$0]  %s37, 128, %s39, [#allocation7]
    $region9: #{tpu_custom_call.1} parent=1 // pred_fallthru
      _
    // Predicated region
    $region10: #{tpu_custom_call.1} parent=1 // pred_check
      _
    $region11: #{tpu_custom_call.1} parent=1 // pred_check_branch
      %43 = sbr.rel (0) target = $region13
    $region12: #{tpu_custom_call.1} parent=1 // pred_region
      %45 = vsyncadd [#allocation7], 0
      %s46 = sshll.u32 %s2, 4
      %s47 = int_to_ptr.hbm [resolvable:$true] %s46
      %s48 = sshll.u32 [#allocation8], 4
      %s49 = int_to_ptr.vmem [resolvable:$true] %s48
      %54 = dma.hbm_to_vmem [thread:$0]  %s47, 4096, %s49, [#allocation7], 256, 256, 16
    $region13: #{tpu_custom_call.1} parent=1 // pred_fallthru
      _
    // Predicated region
    $region14: #{tpu_custom_call.1} parent=1 // pred_check
      _
    $region15: #{tpu_custom_call.1} parent=1 // pred_check_branch
      %56 = sbr.rel (0) target = $region17
    $region16: #{tpu_custom_call.1} parent=1 // pred_region
      _
    $region17: #{tpu_custom_call.1} parent=1 // pred_fallthru
      _
    // Predicated region
    $region18: #{tpu_custom_call.1} parent=1 // pred_check
      _
    $region19: #{tpu_custom_call.1} parent=1 // pred_check_branch
      %58 = sbr.rel (0) target = $region21
    $region20: #{tpu_custom_call.1} parent=1 // pred_region
      %60 = vsyncadd [#allocation10], 0
      %s61 = sshll.u32 %s4, 4
      %s62 = int_to_ptr.hbm [resolvable:$true] %s61
      %s63 = sshll.u32 [#allocation9], 4
      %s64 = int_to_ptr.vmem [resolvable:$true] %s63
      %69 = dma.hbm_to_vmem [thread:$0]  %s62, 2048, %s64, [#allocation10], 128, 128, 8
    $region21: #{tpu_custom_call.1} parent=1 // pred_fallthru
      _
    // Predicated region
    $region22: #{tpu_custom_call.1} parent=1 // pred_check
      _
    $region23: #{tpu_custom_call.1} parent=1 // pred_check_branch
      %71 = sbr.rel (0) target = $region25
    $region24: #{tpu_custom_call.1} parent=1 // pred_region
      _
    $region25: #{tpu_custom_call.1} parent=1 // pred_fallthru
      _
    // Predicated region
    $region26: #{tpu_custom_call.1} parent=1 // pred_check
      _
    $region27: #{tpu_custom_call.1} parent=1 // pred_check_branch
      %73 = sbr.rel (0) target = $region29
    $region28: #{tpu_custom_call.1} parent=1 // pred_region
      %75 = vsyncadd [#allocation10], 0
      %s76 = sshll.u32 %s6, 4
      %s77 = int_to_ptr.hbm [resolvable:$true] %s76
      %s78 = sshll.u32 [#allocation11], 4
      %s79 = int_to_ptr.vmem [resolvable:$true] %s78
      %84 = dma.hbm_to_vmem [thread:$0]  %s77, 2048, %s79, [#allocation10], 128, 128, 8
    $region29: #{tpu_custom_call.1} parent=1 // pred_fallthru
      _
    // Predicated region
    $region30: #{tpu_custom_call.1} parent=1 // pred_check
      _
    $region31: #{tpu_custom_call.1} parent=1 // pred_check_branch
      %86 = sbr.rel (0) target = $region33
    $region32: #{tpu_custom_call.1} parent=1 // pred_region
      _
    $region33: #{tpu_custom_call.1} parent=1 // pred_fallthru
      _
    // Predicated region
    $region34: #{tpu_custom_call.1} parent=1 // pred_check
      _
    $region35: #{tpu_custom_call.1} parent=1 // pred_check_branch
      %88 = sbr.rel (0) target = $region37
    $region36: #{tpu_custom_call.1} parent=1 // pred_region
      %90 = dma.done [#allocation4], 128
    $region37: #{tpu_custom_call.1} parent=1 // pred_fallthru
      _
    // Predicated region
    $region38: #{tpu_custom_call.1} parent=1 // pred_check
      _
    $region39: #{tpu_custom_call.1} parent=1 // pred_check_branch
      %92 = sbr.rel (0) target = $region41
    $region40: #{tpu_custom_call.1} parent=1 // pred_region
      %94 = dma.done [#allocation7], 128
    $region41: #{tpu_custom_call.1} parent=1 // pred_fallthru
      _
    // Predicated region
    $region42: #{tpu_custom_call.1} parent=1 // pred_check
      _
    $region43: #{tpu_custom_call.1} parent=1 // pred_check_branch
      %96 = sbr.rel (0) target = $region45
    $region44: #{tpu_custom_call.1} parent=1 // pred_region
      %98 = dma.done [#allocation7], 4096
    $region45: #{tpu_custom_call.1} parent=1 // pred_fallthru
      _
    // Predicated region
    $region46: #{tpu_custom_call.1} parent=1 // pred_check
      _
    $region47: #{tpu_custom_call.1} parent=1 // pred_check_branch
      %100 = sbr.rel (0) target = $region49
    $region48: #{tpu_custom_call.1} parent=1 // pred_region
      %102 = dma.done [#allocation10], 2048
    $region49: #{tpu_custom_call.1} parent=1 // pred_fallthru
      _
    // Predicated region
    $region50: #{tpu_custom_call.1} parent=1 // pred_check
      _
    $region51: #{tpu_custom_call.1} parent=1 // pred_check_branch
      %104 = sbr.rel (0) target = $region53
    $region52: #{tpu_custom_call.1} parent=1 // pred_region
      %106 = dma.done [#allocation10], 2048
    $region53: #{tpu_custom_call.1} parent=1 // pred_fallthru
      _
    %p107 = scmp.eq.s32.totalorder 0, 0
    // Predicated region
    $region54: #{tpu_custom_call.1} parent=1 // pred_check
      %p108 = pneg %p107
    $region55: #{tpu_custom_call.1} parent=1 // pred_check_branch
      %110 = sbr.rel (%p108) target = $region57
    $region56: #{tpu_custom_call.1} parent=1 // pred_region
      %v111 = vld [vmem:[#allocation6] sm:$0xff]
      %112 = vst [vmem:[#allocation13] sm:$0xff] %v111
      %v113 = vld [vmem:[#allocation8 + $0x8] sm:$0xff]
      %v114 = vld [vmem:[#allocation8 + $0x18] sm:$0xff]
      %v115 = vld [vmem:[#allocation8 + $0x28] sm:$0xff]
      %v116 = vld [vmem:[#allocation8 + $0x38] sm:$0xff]
      %v117 = vld [vmem:[#allocation8 + $0x48] sm:$0xff]
      %v118 = vld [vmem:[#allocation8 + $0x58] sm:$0xff]
      %v119 = vld [vmem:[#allocation8 + $0x68] sm:$0xff]
      %v120 = vld [vmem:[#allocation8 + $0x78] sm:$0xff]
      %v121 = vld [vmem:[#allocation8 + $0x88] sm:$0xff]
      %v122 = vld [vmem:[#allocation8 + $0x98] sm:$0xff]
      %v123 = vld [vmem:[#allocation8 + $0xa8] sm:$0xff]
      %v124 = vld [vmem:[#allocation8 + $0xb8] sm:$0xff]
      %v125 = vld [vmem:[#allocation8 + $0xc8] sm:$0xff]
      %v126 = vld [vmem:[#allocation8 + $0xd8] sm:$0xff]
      %v127 = vld [vmem:[#allocation8 + $0xe8] sm:$0xff]
      %v128 = vld [vmem:[#allocation8 + $0xf8] sm:$0xff]
      %129 = vmatpush.msra.mxu0 %v128
      %130 = vmatpush.msra.mxu0 %v127
      %131 = vmatpush.msra.mxu0 %v126
      %132 = vmatpush.msra.mxu0 %v125
      %133 = vmatpush.msra.mxu0 %v124
      %134 = vmatpush.msra.mxu0 %v123
      %135 = vmatpush.msra.mxu0 %v122
      %136 = vmatpush.msra.mxu0 %v121
      %137 = vmatpush.msra.mxu0 %v120
      %138 = vmatpush.msra.mxu0 %v119
      %139 = vmatpush.msra.mxu0 %v118
      %140 = vmatpush.msra.mxu0 %v117
      %141 = vmatpush.msra.mxu0 %v116
      %142 = vmatpush.msra.mxu0 %v115
      %143 = vmatpush.msra.mxu0 %v114
      %144 = vmatpush.msra.mxu0 %v113
      %145 = vmatmul.f32.gmra.mxu0 %v111
      %v146 = vpop.f32.mrf.mxu0
      %v147 = vadd.f32 0.0, %v146
      %148 = vdwg.mxu0
      %149 = vst [vmem:[#allocation2] sm:$0xff] %v147
    $region57: #{tpu_custom_call.1} parent=1 // pred_fallthru
      _
    %v150 = vld [vmem:[%s3] sm:$0x1]
    %v151 = vld [vmem:[%s7] sm:$0x1]
    %v152 = vld [vmem:[%s5] sm:$0x1]
    %v153 = vld [vmem:[#allocation13] sm:$0xff]
    %v154 = vld [vmem:[#allocation2] sm:$0xff]
    %v155 = vld [vmem:[#allocation3] sm:$0xff]
    %v156 = vadd.f32 %v154, %v155
    %v157 = vmax.f32 %v156, 0.0
    %v158 = vld [vmem:[#allocation9] sm:$0xff]
    %v159 = vld [vmem:[#allocation9 + $0x8] sm:$0xff]
    %v160 = vld [vmem:[#allocation9 + $0x10] sm:$0xff]
    %v161 = vld [vmem:[#allocation9 + $0x18] sm:$0xff]
    %v162 = vld [vmem:[#allocation9 + $0x20] sm:$0xff]
    %v163 = vld [vmem:[#allocation9 + $0x28] sm:$0xff]
    %v164 = vld [vmem:[#allocation9 + $0x30] sm:$0xff]
    %v165 = vld [vmem:[#allocation9 + $0x38] sm:$0xff]
    %v166 = vld [vmem:[#allocation9 + $0x40] sm:$0xff]
    %v167 = vld [vmem:[#allocation9 + $0x48] sm:$0xff]
    %v168 = vld [vmem:[#allocation9 + $0x50] sm:$0xff]
    %v169 = vld [vmem:[#allocation9 + $0x58] sm:$0xff]
    %v170 = vld [vmem:[#allocation9 + $0x60] sm:$0xff]
    %v171 = vld [vmem:[#allocation9 + $0x68] sm:$0xff]
    %v172 = vld [vmem:[#allocation9 + $0x70] sm:$0xff]
    %v173 = vld [vmem:[#allocation9 + $0x78] sm:$0xff]
    %v175 = vperm.slane %v152, 0
    %177 = vmatpush.msra.mxu0 %v173
    %178 = vmatpush.msra.mxu0 %v172
    %179 = vmatpush.msra.mxu0 %v171
    %180 = vmatpush.msra.mxu0 %v170
    %181 = vmatpush.msra.mxu0 %v169
    %182 = vmatpush.msra.mxu0 %v168
    %183 = vmatpush.msra.mxu0 %v167
    %184 = vmatpush.msra.mxu0 %v166
    %185 = vmatpush.msra.mxu0 %v165
    %186 = vmatpush.msra.mxu0 %v164
    %187 = vmatpush.msra.mxu0 %v163
    %188 = vmatpush.msra.mxu0 %v162
    %189 = vmatpush.msra.mxu0 %v161
    %190 = vmatpush.msra.mxu0 %v160
    %191 = vmatpush.msra.mxu0 %v159
    %192 = vmatpush.msra.mxu0 %v158
    %193 = vmatmul.f32.gmra.mxu0 %v157
    %v194 = vpop.f32.mrf.mxu0
    %v195 = vadd.f32 %v175, %v194
    %196 = vdwg.mxu0
    %v197 = vmax.f32 %v195, 0.0
    %v198 = vld [vmem:[#allocation11] sm:$0xff]
    %v199 = vld [vmem:[#allocation11 + $0x8] sm:$0xff]
    %v200 = vld [vmem:[#allocation11 + $0x10] sm:$0xff]
    %v201 = vld [vmem:[#allocation11 + $0x18] sm:$0xff]
    %v202 = vld [vmem:[#allocation11 + $0x20] sm:$0xff]
    %v203 = vld [vmem:[#allocation11 + $0x28] sm:$0xff]
    %v204 = vld [vmem:[#allocation11 + $0x30] sm:$0xff]
    %v205 = vld [vmem:[#allocation11 + $0x38] sm:$0xff]
    %v206 = vld [vmem:[#allocation11 + $0x40] sm:$0xff]
    %v207 = vld [vmem:[#allocation11 + $0x48] sm:$0xff]
    %v208 = vld [vmem:[#allocation11 + $0x50] sm:$0xff]
    %v209 = vld [vmem:[#allocation11 + $0x58] sm:$0xff]
    %v210 = vld [vmem:[#allocation11 + $0x60] sm:$0xff]
    %v211 = vld [vmem:[#allocation11 + $0x68] sm:$0xff]
    %v212 = vld [vmem:[#allocation11 + $0x70] sm:$0xff]
    %v213 = vld [vmem:[#allocation11 + $0x78] sm:$0xff]
    %v215 = vperm.slane %v151, 0
    %217 = vmatpush.msra.mxu0 %v213
    %218 = vmatpush.msra.mxu0 %v212
    %219 = vmatpush.msra.mxu0 %v211
    %220 = vmatpush.msra.mxu0 %v210
    %221 = vmatpush.msra.mxu0 %v209
    %222 = vmatpush.msra.mxu0 %v208
    %223 = vmatpush.msra.mxu0 %v207
    %224 = vmatpush.msra.mxu0 %v206
    %225 = vmatpush.msra.mxu0 %v205
    %226 = vmatpush.msra.mxu0 %v204
    %227 = vmatpush.msra.mxu0 %v203
    %228 = vmatpush.msra.mxu0 %v202
    %229 = vmatpush.msra.mxu0 %v201
    %230 = vmatpush.msra.mxu0 %v200
    %231 = vmatpush.msra.mxu0 %v199
    %232 = vmatpush.msra.mxu0 %v198
    %233 = vmatmul.f32.gmra.mxu0 %v197
    %v234 = vpop.f32.mrf.mxu0
    %v235 = vadd.f32 %v215, %v234
    %236 = vdwg.mxu0
    %v237 = vadd.f32 %v153, %v235
    %v238 = vld [vmem:[#allocation8] sm:$0xff]
    %v239 = vld [vmem:[#allocation8 + $0x8] sm:$0xff]
    %v240 = vld [vmem:[#allocation8 + $0x10] sm:$0xff]
    %v241 = vld [vmem:[#allocation8 + $0x18] sm:$0xff]
    %v242 = vld [vmem:[#allocation8 + $0x20] sm:$0xff]
    %v243 = vld [vmem:[#allocation8 + $0x28] sm:$0xff]
    %v244 = vld [vmem:[#allocation8 + $0x30] sm:$0xff]
    %v245 = vld [vmem:[#allocation8 + $0x38] sm:$0xff]
    %v246 = vld [vmem:[#allocation8 + $0x40] sm:$0xff]
    %v247 = vld [vmem:[#allocation8 + $0x48] sm:$0xff]
    %v248 = vld [vmem:[#allocation8 + $0x50] sm:$0xff]
    %v249 = vld [vmem:[#allocation8 + $0x58] sm:$0xff]
    %v250 = vld [vmem:[#allocation8 + $0x60] sm:$0xff]
    %v251 = vld [vmem:[#allocation8 + $0x68] sm:$0xff]
    %v252 = vld [vmem:[#allocation8 + $0x70] sm:$0xff]
    %v253 = vld [vmem:[#allocation8 + $0x78] sm:$0xff]
    %v254 = vld [vmem:[#allocation8 + $0x80] sm:$0xff]
    %v255 = vld [vmem:[#allocation8 + $0x88] sm:$0xff]
    %v256 = vld [vmem:[#allocation8 + $0x90] sm:$0xff]
    %v257 = vld [vmem:[#allocation8 + $0x98] sm:$0xff]
    %v258 = vld [vmem:[#allocation8 + $0xa0] sm:$0xff]
    %v259 = vld [vmem:[#allocation8 + $0xa8] sm:$0xff]
    %v260 = vld [vmem:[#allocation8 + $0xb0] sm:$0xff]
    %v261 = vld [vmem:[#allocation8 + $0xb8] sm:$0xff]
    %v262 = vld [vmem:[#allocation8 + $0xc0] sm:$0xff]
    %v263 = vld [vmem:[#allocation8 + $0xc8] sm:$0xff]
    %v264 = vld [vmem:[#allocation8 + $0xd0] sm:$0xff]
    %v265 = vld [vmem:[#allocation8 + $0xd8] sm:$0xff]
    %v266 = vld [vmem:[#allocation8 + $0xe0] sm:$0xff]
    %v267 = vld [vmem:[#allocation8 + $0xe8] sm:$0xff]
    %v268 = vld [vmem:[#allocation8 + $0xf0] sm:$0xff]
    %v269 = vld [vmem:[#allocation8 + $0xf8] sm:$0xff]
    %270 = vmatpush.msra.mxu0 %v268
    %271 = vmatpush.msra.mxu0 %v266
    %272 = vmatpush.msra.mxu0 %v264
    %273 = vmatpush.msra.mxu0 %v262
    %274 = vmatpush.msra.mxu0 %v260
    %275 = vmatpush.msra.mxu0 %v258
    %276 = vmatpush.msra.mxu0 %v256
    %277 = vmatpush.msra.mxu0 %v254
    %278 = vmatpush.msra.mxu0 %v252
    %279 = vmatpush.msra.mxu0 %v250
    %280 = vmatpush.msra.mxu0 %v248
    %281 = vmatpush.msra.mxu0 %v246
    %282 = vmatpush.msra.mxu0 %v244
    %283 = vmatpush.msra.mxu0 %v242
    %284 = vmatpush.msra.mxu0 %v240
    %285 = vmatpush.msra.mxu0 %v238
    %286 = vmatmul.f32.gmra.mxu0 %v237
    %v287 = vpop.f32.mrf.mxu0
    %v288 = vadd.f32 0.0, %v287
    %289 = vdwg.mxu0
    %290 = vmatpush.msra.mxu0 %v269
    %291 = vmatpush.msra.mxu0 %v267
    %292 = vmatpush.msra.mxu0 %v265
    %293 = vmatpush.msra.mxu0 %v263
    %294 = vmatpush.msra.mxu0 %v261
    %295 = vmatpush.msra.mxu0 %v259
    %296 = vmatpush.msra.mxu0 %v257
    %297 = vmatpush.msra.mxu0 %v255
    %298 = vmatpush.msra.mxu0 %v253
    %299 = vmatpush.msra.mxu0 %v251
    %300 = vmatpush.msra.mxu0 %v249
    %301 = vmatpush.msra.mxu0 %v247
    %302 = vmatpush.msra.mxu0 %v245
    %303 = vmatpush.msra.mxu0 %v243
    %304 = vmatpush.msra.mxu0 %v241
    %305 = vmatpush.msra.mxu0 %v239
    %306 = vmatmul.f32.gmra.mxu0 %v237
    %v307 = vpop.f32.mrf.mxu0
    %v308 = vadd.f32 0.0, %v307
    %309 = vdwg.mxu0
    %v311 = vperm.slane %v150, 0
    %v313 = vadd.f32 %v288, %v311
    %314 = vst [vmem:[#allocation12] sm:$0xff] %v313
    %315 = vst [vmem:[#allocation13] sm:$0xff] %v237
    %316 = vst [vmem:[#allocation2] sm:$0xff] %v308
    // Predicated region
    $region58: #{tpu_custom_call.1} parent=1 // pred_check
      _
    $region59: #{tpu_custom_call.1} parent=1 // pred_check_branch
      %318 = sbr.rel (0) target = $region61
    $region60: #{tpu_custom_call.1} parent=1 // pred_region
      %320 = vsyncadd [#allocation5], 0
      %s322 = sshll.u32 [#allocation12], 4
      %s323 = int_to_ptr.vmem [resolvable:$true] %s322
      %s324 = sshll.u32 %s8, 4
      %s325 = int_to_ptr.hbm [resolvable:$true] %s324
      %327 = dma.vmem_to_hbm [thread:$0]  %s323, 128, %s325, [#allocation5]
    $region61: #{tpu_custom_call.1} parent=1 // pred_fallthru
      _
    // Predicated region
    $region62: #{tpu_custom_call.1} parent=1 // pred_check
      _
    $region63: #{tpu_custom_call.1} parent=1 // pred_check_branch
      %329 = sbr.rel (0) target = $region65
    $region64: #{tpu_custom_call.1} parent=1 // pred_region
      %331 = vsyncadd [#allocation14], 0
      %s333 = sshll.u32 [#allocation13], 4
      %s334 = int_to_ptr.vmem [resolvable:$true] %s333
      %s335 = sshll.u32 %s9, 4
      %s336 = int_to_ptr.hbm [resolvable:$true] %s335
      %338 = dma.vmem_to_hbm [thread:$0]  %s334, 128, %s336, [#allocation14]
    $region65: #{tpu_custom_call.1} parent=1 // pred_fallthru
      _
    // Predicated region
    $region66: #{tpu_custom_call.1} parent=1 // pred_check
      _
    $region67: #{tpu_custom_call.1} parent=1 // pred_check_branch
      %340 = sbr.rel (0) target = $region69
    $region68: #{tpu_custom_call.1} parent=1 // pred_region
      %342 = dma.done [#allocation5], 128
    $region69: #{tpu_custom_call.1} parent=1 // pred_fallthru
      _
    // Predicated region
    $region70: #{tpu_custom_call.1} parent=1 // pred_check
      _
    $region71: #{tpu_custom_call.1} parent=1 // pred_check_branch
      %344 = sbr.rel (0) target = $region73
    $region72: #{tpu_custom_call.1} parent=1 // pred_region
      %346 = dma.done [#allocation14], 128
    $region73: #{tpu_custom_call.1} parent=1 // pred_fallthru
      _
    %347 = vsyncpa [#allocation4], 1
    %348 = vsyncpa [#allocation7], 1
    %349 = vsyncpa [#allocation10], 1
    %350 = vsyncpa [#allocation5], 1
    %351 = vsyncpa [#allocation14], 1

</llo_original>
